<compile_context>
chip_gen: v5e
topology: v5e:2x2
jax: 0.10.0
libtpu: 0.0.40
codegen_flags: <defaults>
</compile_context>

<pallas_src>
import functools

import jax
import jax.numpy as jnp
from jax import lax
from jax.experimental import pallas as pl
from jax.experimental.pallas import tpu as pltpu

EPS = 1e-12


def _embed_ln_kernel(ids_ref, tok_ref, pos_ref, gamma_ref, beta_ref, o_ref,
                     e_scr, *, seq_len, seq_tile):
    # ids_ref   : (B*S,)    int32  SMEM (scalar-prefetched token ids, flat)
    # tok_ref   : (V, D)           VMEM-resident token table (single-buffered)
    # pos_ref   : (TS, D)          positional rows for this sequence tile
    # gamma_ref : (1, D)           LayerNorm scale (VMEM-resident)
    # beta_ref  : (1, D)           LayerNorm shift (VMEM-resident)
    # o_ref     : (1, TS, D)       output tile
    # e_scr     : (TS, D) f32      gathered-embedding scratch
    s = pl.program_id(0)
    b = pl.program_id(1)
    base = b * seq_len + s * seq_tile

    # Real row gather: dynamic sublane-indexed loads from the resident table.
    def gather_row(r, carry):
        tok_id = ids_ref[base + r]
        e_scr[r] = tok_ref[tok_id].astype(jnp.float32)
        return carry

    lax.fori_loop(0, seq_tile, gather_row, 0,
                  unroll=True if seq_tile <= 64 else 8)

    e = e_scr[...] + pos_ref[...].astype(jnp.float32)            # (TS, D)

    # Two-pass moments (no catastrophic cancellation); eps inside the sqrt.
    inv_d = jnp.float32(1.0 / e.shape[-1])
    u = jnp.sum(e, axis=-1, keepdims=True) * inv_d
    d = e - u
    var = jnp.sum(d * d, axis=-1, keepdims=True) * inv_d
    x = d * lax.rsqrt(var + EPS)

    y = (gamma_ref[...].astype(jnp.float32) * x
         + beta_ref[...].astype(jnp.float32))
    o_ref[0] = y.astype(o_ref.dtype)


def _pick_seq_tile(seq_len, max_tile=512):
    """Largest sublane-friendly sequence tile <= max_tile dividing seq_len."""
    if seq_len <= max_tile:
        return seq_len
    for ts in range(max_tile, 7, -1):
        if seq_len % ts == 0 and ts % 8 == 0:
            return ts
    return seq_len  # fall back: whole sequence as one tile


def embeddings_forward(ids, tok_embed, pos_embed, gamma, beta, *,
                       max_seq_tile=512):
    """ids: (B, S) int -> (B, S, D) in tok_embed.dtype."""
    B, S = ids.shape
    V, D = tok_embed.shape
    L, D2 = pos_embed.shape
    assert D2 == D and S <= L

    tok_bytes = V * D * tok_embed.dtype.itemsize
    assert tok_bytes <= 16 * 1024 * 1024, (
        "token table too large for the VMEM-resident gather path; "
        "see TODO(synk) for the HBM DMA-gather path")

    TS = _pick_seq_tile(S, max_seq_tile)
    assert S % TS == 0, "sequence length must be divisible by the seq tile"
    num_s_tiles = S // TS

    out_dtype = tok_embed.dtype
    ids_flat = ids.astype(jnp.int32).reshape(B * S)   # -> SMEM scalar prefetch
    pos_used = pos_embed[:S]                          # only the rows we touch
    gamma2 = gamma.reshape(1, D)
    beta2 = beta.reshape(1, D)

    # Mem-bound cost model (no fake matmul FLOPs any more).
    out_bytes = B * S * D * jnp.dtype(out_dtype).itemsize
    pos_bytes = S * D * pos_embed.dtype.itemsize
    cost = pl.CostEstimate(
        flops=10 * B * S * D,
        transcendentals=B * S,
        bytes_accessed=(out_bytes + tok_bytes + pos_bytes + 4 * B * S
                        + 2 * D * gamma.dtype.itemsize
                        + 2 * D * beta.dtype.itemsize),
    )

    # Explicit VMEM budget: single-buffered table + double-buffered tiles
    # + f32 scratch + params, with 2x slack; clamped to a per-chip-safe range
    # (>= default scoped limit, <= v7x physical).
    pos_tile_b = TS * D * pos_embed.dtype.itemsize
    out_tile_b = TS * D * jnp.dtype(out_dtype).itemsize
    budget = (tok_bytes + 2 * pos_tile_b + 2 * out_tile_b
              + TS * D * 4 + 4 * D * 4)
    vmem_limit = int(min(max(2 * budget, 32 * 1024 * 1024), 64 * 1024 * 1024))

    kernel = functools.partial(_embed_ln_kernel, seq_len=S, seq_tile=TS)

    out = pl.pallas_call(
        kernel,
        out_shape=jax.ShapeDtypeStruct((B, S, D), out_dtype),
        grid_spec=pltpu.PrefetchScalarGridSpec(
            num_scalar_prefetch=1,
            grid=(num_s_tiles, B),        # batch innermost: pos DMA is reused
            in_specs=[
                # full token table, fetched once, single-buffered
                pl.BlockSpec((V, D), lambda s, b, ids: (0, 0),
                             pipeline_mode=pl.Buffered(buffer_count=1)),
                # positional rows for this sequence tile
                pl.BlockSpec((TS, D), lambda s, b, ids: (s, 0)),
                # LayerNorm scale / shift (constant index, single-buffered)
                pl.BlockSpec((1, D), lambda s, b, ids: (0, 0),
                             pipeline_mode=pl.Buffered(buffer_count=1)),
                pl.BlockSpec((1, D), lambda s, b, ids: (0, 0),
                             pipeline_mode=pl.Buffered(buffer_count=1)),
            ],
            out_specs=pl.BlockSpec((1, TS, D), lambda s, b, ids: (b, s, 0)),
            scratch_shapes=[pltpu.VMEM((TS, D), jnp.float32)],
        ),
        compiler_params=pltpu.CompilerParams(
            dimension_semantics=("parallel", "parallel"),
            vmem_limit_bytes=vmem_limit),
        cost_estimate=cost,
    )(ids_flat, tok_embed, pos_used, gamma2, beta2)

    return out


def _reference(ids, tok_embed, pos_embed, gamma, beta):
    B, S = ids.shape
    pos = jnp.arange(S, dtype=jnp.int32)[None, :]
    e = tok_embed[ids] + pos_embed[pos]
    u = jnp.mean(e, axis=-1, keepdims=True)
    s = jnp.mean((e - u) ** 2, axis=-1, keepdims=True)
    x = (e - u) / jnp.sqrt(s + EPS)
    return gamma * x + beta


if __name__ == "__main__":
    # Small but vreg-friendly shapes: lane-dense hidden dim (D=128) and
    # sublane-dense row tiles (TS=S=16 >= 8).
    B, S, D, V, MAX_LEN = 2, 16, 128, 64, 32

    key = jax.random.PRNGKey(0)
    k_tok, k_pos, k_ids = jax.random.split(key, 3)

    # nn.Embedding default init ~ N(0, 1); LayerNorm gamma=1, beta=0.
    tok_embed = jax.random.normal(k_tok, (V, D), dtype=jnp.float32)
    pos_embed = jax.random.normal(k_pos, (MAX_LEN, D), dtype=jnp.float32)
    gamma = jnp.ones((D,), dtype=jnp.float32)
    beta = jnp.zeros((D,), dtype=jnp.float32)

    ids = jax.random.randint(k_ids, (B, S), 0, V, dtype=jnp.int32)

    out = embeddings_forward(ids, tok_embed, pos_embed, gamma, beta)
    out = jax.block_until_ready(out)

    ref = _reference(ids, tok_embed, pos_embed, gamma, beta)
    assert out.shape == (B, S, D)
    assert jnp.allclose(out, ref, atol=2e-5, rtol=1e-5), float(
        jnp.max(jnp.abs(out - ref)))

    print("KERNEL_OK")
</pallas_src>

<mosaic_0001>
module attributes {stable_mosaic.version = 11 : i64} {
  func.func @_embed_ln_kernel(%arg0: i32, %arg1: i32, %arg2: memref<32xi32, #tpu.memory_space<smem>>, %arg3: memref<64x128xf32, #tpu.memory_space<vmem>>, %arg4: memref<16x128xf32, #tpu.memory_space<vmem>>, %arg5: memref<1x128xf32, #tpu.memory_space<vmem>>, %arg6: memref<1x128xf32, #tpu.memory_space<vmem>>, %arg7: memref<1x16x128xf32, #tpu.memory_space<vmem>>, %arg8: memref<16x128xf32, #tpu.memory_space<vmem>>) attributes {dimension_semantics = [#tpu.dimension_semantics<parallel>, #tpu.dimension_semantics<parallel>], iteration_bounds = array<i64: 1, 2>, scalar_prefetch = 1 : i64, scratch_operands = 1 : i64, tpu.core_type = #tpu.core_type<tc>, window_params = [{pipeline_mode = #tpu.pipeline_mode<synchronous>, transform_indices = @transform_0, window_bounds = array<i64: 64, 128>}, {transform_indices = @transform_1, window_bounds = array<i64: 16, 128>}, {pipeline_mode = #tpu.pipeline_mode<synchronous>, transform_indices = @transform_2, window_bounds = array<i64: 1, 128>}, {pipeline_mode = #tpu.pipeline_mode<synchronous>, transform_indices = @transform_3, window_bounds = array<i64: 1, 128>}, {transform_indices = @transform_4, window_bounds = array<i64: 1, 16, 128>}]} {
    %c16_i32 = arith.constant 16 : i32
    %0 = arith.muli %arg1, %c16_i32 : i32
    %c16_i32_0 = arith.constant 16 : i32
    %1 = arith.muli %arg0, %c16_i32_0 : i32
    %2 = arith.addi %0, %1 : i32
    %c0_i32 = arith.constant 0 : i32
    %3 = arith.addi %2, %c0_i32 : i32
    %4 = arith.index_cast %3 : i32 to index
    %5 = memref.load %arg2[%4] : memref<32xi32, #tpu.memory_space<smem>>
    %6 = arith.index_cast %5 : i32 to index
    %c0 = arith.constant 0 : index
    %7 = vector.load %arg3[%6, %c0] : memref<64x128xf32, #tpu.memory_space<vmem>>, vector<1x128xf32>
    %8 = vector.shape_cast %7 : vector<1x128xf32> to vector<128xf32>
    %9 = arith.index_cast %c0_i32 : i32 to index
    %c0_1 = arith.constant 0 : index
    %10 = vector.load %arg8[%9, %c0_1] : memref<16x128xf32, #tpu.memory_space<vmem>>, vector<1x128xf32>
    %11 = vector.shape_cast %10 : vector<1x128xf32> to vector<128xf32>
    %12 = vector.shape_cast %8 : vector<128xf32> to vector<1x128xf32>
    tpu.vector_store %arg8[%9, %c0_1], %12 {strides = array<i32>} : memref<16x128xf32, #tpu.memory_space<vmem>>, vector<1x128xf32>,
    %c1_i32 = arith.constant 1 : i32
    %13 = arith.addi %2, %c1_i32 : i32
    %14 = arith.index_cast %13 : i32 to index
    %15 = memref.load %arg2[%14] : memref<32xi32, #tpu.memory_space<smem>>
    %16 = arith.index_cast %15 : i32 to index
    %c0_2 = arith.constant 0 : index
    %17 = vector.load %arg3[%16, %c0_2] : memref<64x128xf32, #tpu.memory_space<vmem>>, vector<1x128xf32>
    %18 = vector.shape_cast %17 : vector<1x128xf32> to vector<128xf32>
    %19 = arith.index_cast %c1_i32 : i32 to index
    %c0_3 = arith.constant 0 : index
    %20 = vector.load %arg8[%19, %c0_3] : memref<16x128xf32, #tpu.memory_space<vmem>>, vector<1x128xf32>
    %21 = vector.shape_cast %20 : vector<1x128xf32> to vector<128xf32>
    %22 = vector.shape_cast %18 : vector<128xf32> to vector<1x128xf32>
    tpu.vector_store %arg8[%19, %c0_3], %22 {strides = array<i32>} : memref<16x128xf32, #tpu.memory_space<vmem>>, vector<1x128xf32>,
    %c2_i32 = arith.constant 2 : i32
    %23 = arith.addi %2, %c2_i32 : i32
    %24 = arith.index_cast %23 : i32 to index
    %25 = memref.load %arg2[%24] : memref<32xi32, #tpu.memory_space<smem>>
    %26 = arith.index_cast %25 : i32 to index
    %c0_4 = arith.constant 0 : index
    %27 = vector.load %arg3[%26, %c0_4] : memref<64x128xf32, #tpu.memory_space<vmem>>, vector<1x128xf32>
    %28 = vector.shape_cast %27 : vector<1x128xf32> to vector<128xf32>
    %29 = arith.index_cast %c2_i32 : i32 to index
    %c0_5 = arith.constant 0 : index
    %30 = vector.load %arg8[%29, %c0_5] : memref<16x128xf32, #tpu.memory_space<vmem>>, vector<1x128xf32>
    %31 = vector.shape_cast %30 : vector<1x128xf32> to vector<128xf32>
    %32 = vector.shape_cast %28 : vector<128xf32> to vector<1x128xf32>
    tpu.vector_store %arg8[%29, %c0_5], %32 {strides = array<i32>} : memref<16x128xf32, #tpu.memory_space<vmem>>, vector<1x128xf32>,
    %c3_i32 = arith.constant 3 : i32
    %33 = arith.addi %2, %c3_i32 : i32
    %34 = arith.index_cast %33 : i32 to index
    %35 = memref.load %arg2[%34] : memref<32xi32, #tpu.memory_space<smem>>
    %36 = arith.index_cast %35 : i32 to index
    %c0_6 = arith.constant 0 : index
    %37 = vector.load %arg3[%36, %c0_6] : memref<64x128xf32, #tpu.memory_space<vmem>>, vector<1x128xf32>
    %38 = vector.shape_cast %37 : vector<1x128xf32> to vector<128xf32>
    %39 = arith.index_cast %c3_i32 : i32 to index
    %c0_7 = arith.constant 0 : index
    %40 = vector.load %arg8[%39, %c0_7] : memref<16x128xf32, #tpu.memory_space<vmem>>, vector<1x128xf32>
    %41 = vector.shape_cast %40 : vector<1x128xf32> to vector<128xf32>
    %42 = vector.shape_cast %38 : vector<128xf32> to vector<1x128xf32>
    tpu.vector_store %arg8[%39, %c0_7], %42 {strides = array<i32>} : memref<16x128xf32, #tpu.memory_space<vmem>>, vector<1x128xf32>,
    %c4_i32 = arith.constant 4 : i32
    %43 = arith.addi %2, %c4_i32 : i32
    %44 = arith.index_cast %43 : i32 to index
    %45 = memref.load %arg2[%44] : memref<32xi32, #tpu.memory_space<smem>>
    %46 = arith.index_cast %45 : i32 to index
    %c0_8 = arith.constant 0 : index
    %47 = vector.load %arg3[%46, %c0_8] : memref<64x128xf32, #tpu.memory_space<vmem>>, vector<1x128xf32>
    %48 = vector.shape_cast %47 : vector<1x128xf32> to vector<128xf32>
    %49 = arith.index_cast %c4_i32 : i32 to index
    %c0_9 = arith.constant 0 : index
    %50 = vector.load %arg8[%49, %c0_9] : memref<16x128xf32, #tpu.memory_space<vmem>>, vector<1x128xf32>
    %51 = vector.shape_cast %50 : vector<1x128xf32> to vector<128xf32>
    %52 = vector.shape_cast %48 : vector<128xf32> to vector<1x128xf32>
    tpu.vector_store %arg8[%49, %c0_9], %52 {strides = array<i32>} : memref<16x128xf32, #tpu.memory_space<vmem>>, vector<1x128xf32>,
    %c5_i32 = arith.constant 5 : i32
    %53 = arith.addi %2, %c5_i32 : i32
    %54 = arith.index_cast %53 : i32 to index
    %55 = memref.load %arg2[%54] : memref<32xi32, #tpu.memory_space<smem>>
    %56 = arith.index_cast %55 : i32 to index
    %c0_10 = arith.constant 0 : index
    %57 = vector.load %arg3[%56, %c0_10] : memref<64x128xf32, #tpu.memory_space<vmem>>, vector<1x128xf32>
    %58 = vector.shape_cast %57 : vector<1x128xf32> to vector<128xf32>
    %59 = arith.index_cast %c5_i32 : i32 to index
    %c0_11 = arith.constant 0 : index
    %60 = vector.load %arg8[%59, %c0_11] : memref<16x128xf32, #tpu.memory_space<vmem>>, vector<1x128xf32>
    %61 = vector.shape_cast %60 : vector<1x128xf32> to vector<128xf32>
    %62 = vector.shape_cast %58 : vector<128xf32> to vector<1x128xf32>
    tpu.vector_store %arg8[%59, %c0_11], %62 {strides = array<i32>} : memref<16x128xf32, #tpu.memory_space<vmem>>, vector<1x128xf32>,
    %c6_i32 = arith.constant 6 : i32
    %63 = arith.addi %2, %c6_i32 : i32
    %64 = arith.index_cast %63 : i32 to index
    %65 = memref.load %arg2[%64] : memref<32xi32, #tpu.memory_space<smem>>
    %66 = arith.index_cast %65 : i32 to index
    %c0_12 = arith.constant 0 : index
    %67 = vector.load %arg3[%66, %c0_12] : memref<64x128xf32, #tpu.memory_space<vmem>>, vector<1x128xf32>
    %68 = vector.shape_cast %67 : vector<1x128xf32> to vector<128xf32>
    %69 = arith.index_cast %c6_i32 : i32 to index
    %c0_13 = arith.constant 0 : index
    %70 = vector.load %arg8[%69, %c0_13] : memref<16x128xf32, #tpu.memory_space<vmem>>, vector<1x128xf32>
    %71 = vector.shape_cast %70 : vector<1x128xf32> to vector<128xf32>
    %72 = vector.shape_cast %68 : vector<128xf32> to vector<1x128xf32>
    tpu.vector_store %arg8[%69, %c0_13], %72 {strides = array<i32>} : memref<16x128xf32, #tpu.memory_space<vmem>>, vector<1x128xf32>,
    %c7_i32 = arith.constant 7 : i32
    %73 = arith.addi %2, %c7_i32 : i32
    %74 = arith.index_cast %73 : i32 to index
    %75 = memref.load %arg2[%74] : memref<32xi32, #tpu.memory_space<smem>>
    %76 = arith.index_cast %75 : i32 to index
    %c0_14 = arith.constant 0 : index
    %77 = vector.load %arg3[%76, %c0_14] : memref<64x128xf32, #tpu.memory_space<vmem>>, vector<1x128xf32>
    %78 = vector.shape_cast %77 : vector<1x128xf32> to vector<128xf32>
    %79 = arith.index_cast %c7_i32 : i32 to index
    %c0_15 = arith.constant 0 : index
    %80 = vector.load %arg8[%79, %c0_15] : memref<16x128xf32, #tpu.memory_space<vmem>>, vector<1x128xf32>
    %81 = vector.shape_cast %80 : vector<1x128xf32> to vector<128xf32>
    %82 = vector.shape_cast %78 : vector<128xf32> to vector<1x128xf32>
    tpu.vector_store %arg8[%79, %c0_15], %82 {strides = array<i32>} : memref<16x128xf32, #tpu.memory_space<vmem>>, vector<1x128xf32>,
    %c8_i32 = arith.constant 8 : i32
    %83 = arith.addi %2, %c8_i32 : i32
    %84 = arith.index_cast %83 : i32 to index
    %85 = memref.load %arg2[%84] : memref<32xi32, #tpu.memory_space<smem>>
    %86 = arith.index_cast %85 : i32 to index
    %c0_16 = arith.constant 0 : index
    %87 = vector.load %arg3[%86, %c0_16] : memref<64x128xf32, #tpu.memory_space<vmem>>, vector<1x128xf32>
    %88 = vector.shape_cast %87 : vector<1x128xf32> to vector<128xf32>
    %89 = arith.index_cast %c8_i32 : i32 to index
    %c0_17 = arith.constant 0 : index
    %90 = vector.load %arg8[%89, %c0_17] : memref<16x128xf32, #tpu.memory_space<vmem>>, vector<1x128xf32>
    %91 = vector.shape_cast %90 : vector<1x128xf32> to vector<128xf32>
    %92 = vector.shape_cast %88 : vector<128xf32> to vector<1x128xf32>
    tpu.vector_store %arg8[%89, %c0_17], %92 {strides = array<i32>} : memref<16x128xf32, #tpu.memory_space<vmem>>, vector<1x128xf32>,
    %c9_i32 = arith.constant 9 : i32
    %93 = arith.addi %2, %c9_i32 : i32
    %94 = arith.index_cast %93 : i32 to index
    %95 = memref.load %arg2[%94] : memref<32xi32, #tpu.memory_space<smem>>
    %96 = arith.index_cast %95 : i32 to index
    %c0_18 = arith.constant 0 : index
    %97 = vector.load %arg3[%96, %c0_18] : memref<64x128xf32, #tpu.memory_space<vmem>>, vector<1x128xf32>
    %98 = vector.shape_cast %97 : vector<1x128xf32> to vector<128xf32>
    %99 = arith.index_cast %c9_i32 : i32 to index
    %c0_19 = arith.constant 0 : index
    %100 = vector.load %arg8[%99, %c0_19] : memref<16x128xf32, #tpu.memory_space<vmem>>, vector<1x128xf32>
    %101 = vector.shape_cast %100 : vector<1x128xf32> to vector<128xf32>
    %102 = vector.shape_cast %98 : vector<128xf32> to vector<1x128xf32>
    tpu.vector_store %arg8[%99, %c0_19], %102 {strides = array<i32>} : memref<16x128xf32, #tpu.memory_space<vmem>>, vector<1x128xf32>,
    %c10_i32 = arith.constant 10 : i32
    %103 = arith.addi %2, %c10_i32 : i32
    %104 = arith.index_cast %103 : i32 to index
    %105 = memref.load %arg2[%104] : memref<32xi32, #tpu.memory_space<smem>>
    %106 = arith.index_cast %105 : i32 to index
    %c0_20 = arith.constant 0 : index
    %107 = vector.load %arg3[%106, %c0_20] : memref<64x128xf32, #tpu.memory_space<vmem>>, vector<1x128xf32>
    %108 = vector.shape_cast %107 : vector<1x128xf32> to vector<128xf32>
    %109 = arith.index_cast %c10_i32 : i32 to index
    %c0_21 = arith.constant 0 : index
    %110 = vector.load %arg8[%109, %c0_21] : memref<16x128xf32, #tpu.memory_space<vmem>>, vector<1x128xf32>
    %111 = vector.shape_cast %110 : vector<1x128xf32> to vector<128xf32>
    %112 = vector.shape_cast %108 : vector<128xf32> to vector<1x128xf32>
    tpu.vector_store %arg8[%109, %c0_21], %112 {strides = array<i32>} : memref<16x128xf32, #tpu.memory_space<vmem>>, vector<1x128xf32>,
    %c11_i32 = arith.constant 11 : i32
    %113 = arith.addi %2, %c11_i32 : i32
    %114 = arith.index_cast %113 : i32 to index
    %115 = memref.load %arg2[%114] : memref<32xi32, #tpu.memory_space<smem>>
    %116 = arith.index_cast %115 : i32 to index
    %c0_22 = arith.constant 0 : index
    %117 = vector.load %arg3[%116, %c0_22] : memref<64x128xf32, #tpu.memory_space<vmem>>, vector<1x128xf32>
    %118 = vector.shape_cast %117 : vector<1x128xf32> to vector<128xf32>
    %119 = arith.index_cast %c11_i32 : i32 to index
    %c0_23 = arith.constant 0 : index
    %120 = vector.load %arg8[%119, %c0_23] : memref<16x128xf32, #tpu.memory_space<vmem>>, vector<1x128xf32>
    %121 = vector.shape_cast %120 : vector<1x128xf32> to vector<128xf32>
    %122 = vector.shape_cast %118 : vector<128xf32> to vector<1x128xf32>
    tpu.vector_store %arg8[%119, %c0_23], %122 {strides = array<i32>} : memref<16x128xf32, #tpu.memory_space<vmem>>, vector<1x128xf32>,
    %c12_i32 = arith.constant 12 : i32
    %123 = arith.addi %2, %c12_i32 : i32
    %124 = arith.index_cast %123 : i32 to index
    %125 = memref.load %arg2[%124] : memref<32xi32, #tpu.memory_space<smem>>
    %126 = arith.index_cast %125 : i32 to index
    %c0_24 = arith.constant 0 : index
    %127 = vector.load %arg3[%126, %c0_24] : memref<64x128xf32, #tpu.memory_space<vmem>>, vector<1x128xf32>
    %128 = vector.shape_cast %127 : vector<1x128xf32> to vector<128xf32>
    %129 = arith.index_cast %c12_i32 : i32 to index
    %c0_25 = arith.constant 0 : index
    %130 = vector.load %arg8[%129, %c0_25] : memref<16x128xf32, #tpu.memory_space<vmem>>, vector<1x128xf32>
    %131 = vector.shape_cast %130 : vector<1x128xf32> to vector<128xf32>
    %132 = vector.shape_cast %128 : vector<128xf32> to vector<1x128xf32>
    tpu.vector_store %arg8[%129, %c0_25], %132 {strides = array<i32>} : memref<16x128xf32, #tpu.memory_space<vmem>>, vector<1x128xf32>,
    %c13_i32 = arith.constant 13 : i32
    %133 = arith.addi %2, %c13_i32 : i32
    %134 = arith.index_cast %133 : i32 to index
    %135 = memref.load %arg2[%134] : memref<32xi32, #tpu.memory_space<smem>>
    %136 = arith.index_cast %135 : i32 to index
    %c0_26 = arith.constant 0 : index
    %137 = vector.load %arg3[%136, %c0_26] : memref<64x128xf32, #tpu.memory_space<vmem>>, vector<1x128xf32>
    %138 = vector.shape_cast %137 : vector<1x128xf32> to vector<128xf32>
    %139 = arith.index_cast %c13_i32 : i32 to index
    %c0_27 = arith.constant 0 : index
    %140 = vector.load %arg8[%139, %c0_27] : memref<16x128xf32, #tpu.memory_space<vmem>>, vector<1x128xf32>
    %141 = vector.shape_cast %140 : vector<1x128xf32> to vector<128xf32>
    %142 = vector.shape_cast %138 : vector<128xf32> to vector<1x128xf32>
    tpu.vector_store %arg8[%139, %c0_27], %142 {strides = array<i32>} : memref<16x128xf32, #tpu.memory_space<vmem>>, vector<1x128xf32>,
    %c14_i32 = arith.constant 14 : i32
    %143 = arith.addi %2, %c14_i32 : i32
    %144 = arith.index_cast %143 : i32 to index
    %145 = memref.load %arg2[%144] : memref<32xi32, #tpu.memory_space<smem>>
    %146 = arith.index_cast %145 : i32 to index
    %c0_28 = arith.constant 0 : index
    %147 = vector.load %arg3[%146, %c0_28] : memref<64x128xf32, #tpu.memory_space<vmem>>, vector<1x128xf32>
    %148 = vector.shape_cast %147 : vector<1x128xf32> to vector<128xf32>
    %149 = arith.index_cast %c14_i32 : i32 to index
    %c0_29 = arith.constant 0 : index
    %150 = vector.load %arg8[%149, %c0_29] : memref<16x128xf32, #tpu.memory_space<vmem>>, vector<1x128xf32>
    %151 = vector.shape_cast %150 : vector<1x128xf32> to vector<128xf32>
    %152 = vector.shape_cast %148 : vector<128xf32> to vector<1x128xf32>
    tpu.vector_store %arg8[%149, %c0_29], %152 {strides = array<i32>} : memref<16x128xf32, #tpu.memory_space<vmem>>, vector<1x128xf32>,
    %c15_i32 = arith.constant 15 : i32
    %153 = arith.addi %2, %c15_i32 : i32
    %154 = arith.index_cast %153 : i32 to index
    %155 = memref.load %arg2[%154] : memref<32xi32, #tpu.memory_space<smem>>
    %156 = arith.index_cast %155 : i32 to index
    %c0_30 = arith.constant 0 : index
    %157 = vector.load %arg3[%156, %c0_30] : memref<64x128xf32, #tpu.memory_space<vmem>>, vector<1x128xf32>
    %158 = vector.shape_cast %157 : vector<1x128xf32> to vector<128xf32>
    %159 = arith.index_cast %c15_i32 : i32 to index
    %c0_31 = arith.constant 0 : index
    %160 = vector.load %arg8[%159, %c0_31] : memref<16x128xf32, #tpu.memory_space<vmem>>, vector<1x128xf32>
    %161 = vector.shape_cast %160 : vector<1x128xf32> to vector<128xf32>
    %162 = vector.shape_cast %158 : vector<128xf32> to vector<1x128xf32>
    tpu.vector_store %arg8[%159, %c0_31], %162 {strides = array<i32>} : memref<16x128xf32, #tpu.memory_space<vmem>>, vector<1x128xf32>,
    %c16_i32_32 = arith.constant 16 : i32
    %c0_33 = arith.constant 0 : index
    %c0_34 = arith.constant 0 : index
    %163 = vector.load %arg8[%c0_33, %c0_34] : memref<16x128xf32, #tpu.memory_space<vmem>>, vector<16x128xf32>
    %c0_35 = arith.constant 0 : index
    %c0_36 = arith.constant 0 : index
    %164 = vector.load %arg4[%c0_35, %c0_36] : memref<16x128xf32, #tpu.memory_space<vmem>>, vector<16x128xf32>
    %165 = arith.addf %163, %164 : vector<16x128xf32>
    %cst = arith.constant dense<0.000000e+00> : vector<16xf32>
    %166 = vector.multi_reduction <add>, %165, %cst [1] : vector<16x128xf32> to vector<16xf32>
    %167 = vector.shape_cast %166 : vector<16xf32> to vector<16x1xf32>
    %cst_37 = arith.constant 7.812500e-03 : f32
    %168 = vector.broadcast %cst_37 : f32 to vector<16x1xf32>
    %169 = arith.mulf %167, %168 : vector<16x1xf32>
    %170 = vector.broadcast %169 : vector<16x1xf32> to vector<16x128xf32>
    %171 = arith.subf %165, %170 : vector<16x128xf32>
    %172 = arith.mulf %171, %171 : vector<16x128xf32>
    %cst_38 = arith.constant dense<0.000000e+00> : vector<16xf32>
    %173 = vector.multi_reduction <add>, %172, %cst_38 [1] : vector<16x128xf32> to vector<16xf32>
    %174 = vector.shape_cast %173 : vector<16xf32> to vector<16x1xf32>
    %cst_39 = arith.constant 7.812500e-03 : f32
    %175 = vector.broadcast %cst_39 : f32 to vector<16x1xf32>
    %176 = arith.mulf %174, %175 : vector<16x1xf32>
    %cst_40 = arith.constant 9.99999996E-13 : f32
    %177 = vector.broadcast %cst_40 : f32 to vector<16x1xf32>
    %178 = arith.addf %176, %177 : vector<16x1xf32>
    %179 = math.rsqrt %178 : vector<16x1xf32>
    %180 = vector.broadcast %179 : vector<16x1xf32> to vector<16x128xf32>
    %181 = arith.mulf %171, %180 : vector<16x128xf32>
    %c0_41 = arith.constant 0 : index
    %c0_42 = arith.constant 0 : index
    %182 = vector.load %arg5[%c0_41, %c0_42] : memref<1x128xf32, #tpu.memory_space<vmem>>, vector<1x128xf32>
    %183 = vector.broadcast %182 : vector<1x128xf32> to vector<16x128xf32>
    %184 = arith.mulf %183, %181 : vector<16x128xf32>
    %c0_43 = arith.constant 0 : index
    %c0_44 = arith.constant 0 : index
    %185 = vector.load %arg6[%c0_43, %c0_44] : memref<1x128xf32, #tpu.memory_space<vmem>>, vector<1x128xf32>
    %186 = vector.broadcast %185 : vector<1x128xf32> to vector<16x128xf32>
    %187 = arith.addf %184, %186 : vector<16x128xf32>
    %c0_45 = arith.constant 0 : index
    %c0_46 = arith.constant 0 : index
    %c0_47 = arith.constant 0 : index
    %188 = vector.load %arg7[%c0_45, %c0_46, %c0_47] : memref<1x16x128xf32, #tpu.memory_space<vmem>>, vector<1x16x128xf32>
    %189 = vector.shape_cast %188 : vector<1x16x128xf32> to vector<16x128xf32>
    %190 = vector.shape_cast %187 : vector<16x128xf32> to vector<1x16x128xf32>
    tpu.vector_store %arg7[%c0_45, %c0_46, %c0_47], %190 {strides = array<i32>} : memref<1x16x128xf32, #tpu.memory_space<vmem>>, vector<1x16x128xf32>,
    return
  }
  func.func @transform_0(%arg0: i32, %arg1: i32, %arg2: memref<32xi32, #tpu.memory_space<smem>>) -> (i32, i32) {
    %c0_i32 = arith.constant 0 : i32
    %c0_i32_0 = arith.constant 0 : i32
    %c0_i32_1 = arith.constant 0 : i32
    return %c0_i32, %c0_i32_0 : i32, i32
  }
  func.func @transform_1(%arg0: i32, %arg1: i32, %arg2: memref<32xi32, #tpu.memory_space<smem>>) -> (i32, i32) {
    %c0_i32 = arith.constant 0 : i32
    %c0_i32_0 = arith.constant 0 : i32
    return %arg0, %c0_i32 : i32, i32
  }
  func.func @transform_2(%arg0: i32, %arg1: i32, %arg2: memref<32xi32, #tpu.memory_space<smem>>) -> (i32, i32) {
    %c0_i32 = arith.constant 0 : i32
    %c0_i32_0 = arith.constant 0 : i32
    %c0_i32_1 = arith.constant 0 : i32
    return %c0_i32, %c0_i32_0 : i32, i32
  }
  func.func @transform_3(%arg0: i32, %arg1: i32, %arg2: memref<32xi32, #tpu.memory_space<smem>>) -> (i32, i32) {
    %c0_i32 = arith.constant 0 : i32
    %c0_i32_0 = arith.constant 0 : i32
    %c0_i32_1 = arith.constant 0 : i32
    return %c0_i32, %c0_i32_0 : i32, i32
  }
  func.func @transform_4(%arg0: i32, %arg1: i32, %arg2: memref<32xi32, #tpu.memory_space<smem>>) -> (i32, i32, i32) {
    %c0_i32 = arith.constant 0 : i32
    %c0_i32_0 = arith.constant 0 : i32
    return %arg1, %arg0, %c0_i32 : i32, i32, i32
  }
}

</mosaic_0001>

<llo_original>
// kernel: tpu_custom_call.1
$region0: #{tpu_custom_call.1}
  #allocation0 [shape = 'u32[]', space=smem, size = 0x4, offset = 0x4, fixed_abs, tag = 'smem constant byte address 0x4 - core index']
  #allocation1 [shape = 'u32[72,128]{1,0:T(1,128)}', space=vmem, size = 0x9000, scoped, tag = 'internal scratch']
  #allocation2 [shape = 'f32[16,128]{1,0:T(8,128)}', space=vmem, size = 0x2000, scoped, tag = 'scratch operand']
  #allocation3 [shape = 's32[1]{0}', space=sflag, size = 0x4, scoped, tag = 'scoped memory for tpu_custom_call.1']
  #allocation4 [shape = 'u8[512]{0}', space=smem, size = 0x200, scoped, tag = 'prefetched SMEM operand 0']
  %s0 = inlined_call_operand.hbm [shape: s32[32], index: 0, kind: input, shape index: {}]
  %s1 = inlined_call_operand.hbm [shape: f32[64,128], index: 1, kind: input, shape index: {}]
  %s2 = inlined_call_operand.hbm [shape: f32[16,128], index: 2, kind: input, shape index: {}]
  %s3 = inlined_call_operand.vmem [shape: f32[1,128], index: 3, kind: input, shape index: {}]
  %s4 = inlined_call_operand.vmem [shape: f32[1,128], index: 4, kind: input, shape index: {}]
  %s5 = inlined_call_operand.hbm [shape: f32[2,16,128], index: 5, kind: output, shape index: {}]
  %s6 = sld [smem:[#allocation0]]
  $region57: #{tpu_custom_call.1} parent=0
    _
  %s8 = ssub.s32 1, %s6
  %s9 = scalar_select 0, %s8, %s6
  %s11 = sshll.u32 %s0, 4
  %s12 = int_to_ptr.hbm [resolvable:$true] %s11
  %14 = dma.hbm_to_smem %s12, 16, [#allocation4], [#allocation3]
  %16 = dma.done [#allocation3], 16
  %17 = sfence
  $region1: #{tpu_custom_call.1} parent=0
    #allocation5 [shape = 'u8[32768]{0}', space=vmem, size = 0x8000, scoped, tag = 'input window, operand 1, single buffered']
    #allocation6 [shape = 's32[2]{0}', space=sflag, size = 0x8, scoped, tag = 'scoped memory for tpu_custom_call.1']
    #allocation7 [shape = 's32[2]{0}', space=sflag, size = 0x8, scoped, tag = 'scoped memory for tpu_custom_call.1']
    #allocation8 [shape = 'u8[8192]{0}', space=vmem, size = 0x2000, scoped, tag = 'input window, operand 2, single buffered']
    #allocation9 [shape = 's32[1]{0}', space=sflag, size = 0x4, scoped, tag = 'scoped memory for tpu_custom_call.1']
    #allocation10 [shape = 'u8[16384]{0}', space=vmem, size = 0x4000, scoped, tag = 'output window, operand 0']
    %18 = vsyncpa [#allocation6], 0
    %19 = vsyncpa [#allocation9], 0
    %20 = vsyncpa [#allocation7], 0
    %s21 = scalar_lea.sflag [#allocation7], 1
    %22 = vsyncpa %s21, 0
    loop: start=0, step=1, limit=4
    $region2: #{tpu_custom_call.1} parent=1 // loop_pre_header
      _
    $region3: #{tpu_custom_call.1} parent=1 // loop_header
      %s24 = sphi 0, %s28
      %p25 = scmp.ge.s32.totalorder %s24, 4
      %s31 = sphi 0, %s43
      %s32 = sphi 0, %s39
      %s33 = sphi 0, %s31
      %s34 = sphi 0, %s32
      %s35 = sphi 0, %s33
      %s36 = sphi 0, %s34
      %s44 = sphi 0, %s44
      %s46 = sphi 0, %s44
      %s47 = sphi 0, %s46
      %s61 = sphi 0, %s47
      %s67 = sphi 0, %s69
      %s70 = sphi 0, %s67
      %s71 = sphi 0, %s70
      %s87 = sphi 0, %s71
      %s91 = sphi 0, %s91
      %s93 = sphi 0, %s91
      %s94 = sphi 0, %s93
      %s108 = sphi 0, %s94
      %s112 = sphi 0, %s112
      %s114 = sphi 0, %s112
      %s115 = sphi 0, %s114
      %s129 = sphi 0, %s115
      %s137 = sphi 0, %s139
      %s140 = sphi 0, %s137
      %s141 = sphi 0, %s140
      %s157 = sphi 0, %s141
    $region4: #{tpu_custom_call.1} parent=1 // loop_header_branch
      %27 = sbr.rel (%p25) target = $region8
    $region5: #{tpu_custom_call.1} parent=1 // loop_body
      %s29 = ssub.s32 %s24, 1
      %s30 = ssub.s32 %s24, 2
      %s37 = sadd.s32 1, %s32
      %p38 = scmp.ge.s32.totalorder %s37, 2
      %s39 = scalar_select %p38, 0, %s37
      %s40 = sadd.s32 1, %s31
      %s41 = scalar_select %p38, %s40, %s31
      %p42 = scmp.ge.s32.totalorder %s41, 1
      %s43 = scalar_select %p42, 0, %s41
      %s45 = sadd.s32 %s44, 1
      %p48 = scmp.eq.s32.totalorder %s24, 1
      %p49 = scmp.ne.s32.totalorder %s44, %s46
      %p50 = scmp.eq.s32.totalorder %s24, 0
      %p51 = por %p49, %p50
      %p52 = scmp.ne.s32.totalorder %s44, %s46
      %p53 = scmp.eq.s32.totalorder %s29, 1
      %p54 = por %p52, %p53
      %p55 = scmp.ne.s32.totalorder %s46, %s47
      %p56 = scmp.eq.s32.totalorder %s29, 0
      %p57 = por %p55, %p56
      %p58 = scmp.ne.s32.totalorder %s46, %s47
      %p59 = scmp.eq.s32.totalorder %s30, 1
      %p60 = por %p58, %p59
      %p62 = scmp.ne.s32.totalorder %s47, %s61
      %p63 = scmp.eq.s32.totalorder %s30, 0
      %p64 = por %p62, %p63
      %s65 = ssub.s32 %s31, %s43
      %p66 = scmp.eq.s32.totalorder %s65, 0
      %s68 = sadd.s32 %s67, 1
      %s69 = scalar_select %p66, %s67, %s68
      %p72 = pneg %p66
      %p73 = scmp.eq.s32.totalorder %s24, 1
      %p74 = por %p72, %p73
      %p75 = scmp.ne.s32.totalorder %s67, %s70
      %p76 = scmp.eq.s32.totalorder %s24, 0
      %p77 = por %p75, %p76
      %p78 = scmp.ne.s32.totalorder %s67, %s70
      %p79 = scmp.eq.s32.totalorder %s29, 1
      %p80 = por %p78, %p79
      %p81 = scmp.ne.s32.totalorder %s70, %s71
      %p82 = scmp.eq.s32.totalorder %s29, 0
      %p83 = por %p81, %p82
      %p84 = scmp.ne.s32.totalorder %s70, %s71
      %p85 = scmp.eq.s32.totalorder %s30, 1
      %p86 = por %p84, %p85
      %p88 = scmp.ne.s32.totalorder %s71, %s87
      %p89 = scmp.eq.s32.totalorder %s30, 0
      %p90 = por %p88, %p89
      %s92 = sadd.s32 %s91, 1
      %p95 = scmp.eq.s32.totalorder %s24, 1
      %p96 = scmp.ne.s32.totalorder %s91, %s93
      %p97 = scmp.eq.s32.totalorder %s24, 0
      %p98 = por %p96, %p97
      %p99 = scmp.ne.s32.totalorder %s91, %s93
      %p100 = scmp.eq.s32.totalorder %s29, 1
      %p101 = por %p99, %p100
      %p102 = scmp.ne.s32.totalorder %s93, %s94
      %p103 = scmp.eq.s32.totalorder %s29, 0
      %p104 = por %p102, %p103
      %p105 = scmp.ne.s32.totalorder %s93, %s94
      %p106 = scmp.eq.s32.totalorder %s30, 1
      %p107 = por %p105, %p106
      %p109 = scmp.ne.s32.totalorder %s94, %s108
      %p110 = scmp.eq.s32.totalorder %s30, 0
      %p111 = por %p109, %p110
      %s113 = sadd.s32 %s112, 1
      %p116 = scmp.eq.s32.totalorder %s24, 1
      %p117 = scmp.ne.s32.totalorder %s112, %s114
      %p118 = scmp.eq.s32.totalorder %s24, 0
      %p119 = por %p117, %p118
      %p120 = scmp.ne.s32.totalorder %s112, %s114
      %p121 = scmp.eq.s32.totalorder %s29, 1
      %p122 = por %p120, %p121
      %p123 = scmp.ne.s32.totalorder %s114, %s115
      %p124 = scmp.eq.s32.totalorder %s29, 0
      %p125 = por %p123, %p124
      %p126 = scmp.ne.s32.totalorder %s114, %s115
      %p127 = scmp.eq.s32.totalorder %s30, 1
      %p128 = por %p126, %p127
      %p130 = scmp.ne.s32.totalorder %s115, %s129
      %p131 = scmp.eq.s32.totalorder %s30, 0
      %p132 = por %p130, %p131
      %s133 = ssub.s32 %s32, %s39
      %s134 = ssub.s32 %s31, %s43
      %s135 = sor.u32 %s133, %s134
      %p136 = scmp.eq.s32.totalorder %s135, 0
      %s138 = sadd.s32 %s137, 1
      %s139 = scalar_select %p136, %s137, %s138
      %p142 = pneg %p136
      %p143 = scmp.eq.s32.totalorder %s24, 1
      %p144 = por %p142, %p143
      %p145 = scmp.ne.s32.totalorder %s137, %s140
      %p146 = scmp.eq.s32.totalorder %s24, 0
      %p147 = por %p145, %p146
      %p148 = scmp.ne.s32.totalorder %s137, %s140
      %p149 = scmp.eq.s32.totalorder %s29, 1
      %p150 = por %p148, %p149
      %p151 = scmp.ne.s32.totalorder %s140, %s141
      %p152 = scmp.eq.s32.totalorder %s29, 0
      %p153 = por %p151, %p152
      %p154 = scmp.ne.s32.totalorder %s140, %s141
      %p155 = scmp.eq.s32.totalorder %s30, 1
      %p156 = por %p154, %p155
      %p158 = scmp.ne.s32.totalorder %s141, %s157
      %p159 = scmp.eq.s32.totalorder %s30, 0
      %p160 = por %p158, %p159
      %p161 = scmp.le.s32.totalorder 1, %s24
      %p162 = scmp.lt.s32.totalorder %s24, 3
      %p163 = pnand %p161, %p162
      %p164 = pneg %p163
      // Predicated region
      $region9: #{tpu_custom_call.1} parent=5 // pred_check
        _
      $region10: #{tpu_custom_call.1} parent=5 // pred_check_branch
        %166 = sbr.rel (%p163) target = $region12
      $region11: #{tpu_custom_call.1} parent=5 // pred_region
        %s167 = ssub.s32 %s24, 1
        // Predicated region
        $region13: #{tpu_custom_call.1} parent=11 // pred_check
          %p168 = pneg %p57
        $region14: #{tpu_custom_call.1} parent=11 // pred_check_branch
          %170 = sbr.rel (%p168) target = $region16
        $region15: #{tpu_custom_call.1} parent=11 // pred_region
          %172 = vsyncadd [#allocation6], 0
          %s173 = sshll.u32 %s1, 4
          %s174 = int_to_ptr.hbm [resolvable:$true] %s173
          %s175 = sshll.u32 [#allocation5], 4
          %s176 = int_to_ptr.vmem [resolvable:$true] %s175
          %181 = dma.hbm_to_vmem [thread:$0]  %s174, 1024, %s176, [#allocation6], 128, 128, 8
        $region16: #{tpu_custom_call.1} parent=11 // pred_fallthru
          _
        // Predicated region
        $region17: #{tpu_custom_call.1} parent=11 // pred_check
          %p182 = pneg %p83
        $region18: #{tpu_custom_call.1} parent=11 // pred_check_branch
          %184 = sbr.rel (%p182) target = $region20
        $region19: #{tpu_custom_call.1} parent=11 // pred_region
          %s185 = smul.u32 2, %s33
          %187 = vsyncadd [#allocation9], 0
          %s188 = smul.addr %s185, 8
          %s189 = scalar_lea.hbm %s2, %s188
          %s190 = sshll.u32 %s189, 4
          %s191 = int_to_ptr.hbm [resolvable:$true] %s190
          %s192 = sshll.u32 [#allocation8], 4
          %s193 = int_to_ptr.vmem [resolvable:$true] %s192
          %198 = dma.hbm_to_vmem [thread:$0]  %s191, 256, %s193, [#allocation9], 128, 128, 8
        $region20: #{tpu_custom_call.1} parent=11 // pred_fallthru
          _
        // Predicated region
        $region21: #{tpu_custom_call.1} parent=11 // pred_check
          %p199 = pneg %p104
        $region22: #{tpu_custom_call.1} parent=11 // pred_check_branch
          %201 = sbr.rel (%p199) target = $region24
        $region23: #{tpu_custom_call.1} parent=11 // pred_region
          _
        $region24: #{tpu_custom_call.1} parent=11 // pred_fallthru
          _
        // Predicated region
        $region25: #{tpu_custom_call.1} parent=11 // pred_check
          %p202 = pneg %p125
        $region26: #{tpu_custom_call.1} parent=11 // pred_check_branch
          %204 = sbr.rel (%p202) target = $region28
        $region27: #{tpu_custom_call.1} parent=11 // pred_region
          _
        $region28: #{tpu_custom_call.1} parent=11 // pred_fallthru
          _
      $region12: #{tpu_custom_call.1} parent=5 // pred_fallthru
        _
      %p205 = scmp.lt.s32.totalorder %s24, 2
      // Predicated region
      $region29: #{tpu_custom_call.1} parent=5 // pred_check
        %p206 = pneg %p205
      $region30: #{tpu_custom_call.1} parent=5 // pred_check_branch
        %208 = sbr.rel (%p206) target = $region32
      $region31: #{tpu_custom_call.1} parent=5 // pred_region
        _
      $region32: #{tpu_custom_call.1} parent=5 // pred_fallthru
        _
      %p209 = scmp.le.s32.totalorder 1, %s24
      %p210 = scmp.lt.s32.totalorder %s24, 3
      %p211 = pnand %p209, %p210
      %p212 = pneg %p211
      // Predicated region
      $region33: #{tpu_custom_call.1} parent=5 // pred_check
        _
      $region34: #{tpu_custom_call.1} parent=5 // pred_check_branch
        %214 = sbr.rel (%p211) target = $region36
      $region35: #{tpu_custom_call.1} parent=5 // pred_region
        %s215 = ssub.s32 %s24, 1
        // Predicated region
        $region37: #{tpu_custom_call.1} parent=35 // pred_check
          %p216 = pneg %p57
        $region38: #{tpu_custom_call.1} parent=35 // pred_check_branch
          %218 = sbr.rel (%p216) target = $region40
        $region39: #{tpu_custom_call.1} parent=35 // pred_region
          %220 = dma.done [#allocation6], 1024
        $region40: #{tpu_custom_call.1} parent=35 // pred_fallthru
          _
        // Predicated region
        $region41: #{tpu_custom_call.1} parent=35 // pred_check
          %p221 = pneg %p83
        $region42: #{tpu_custom_call.1} parent=35 // pred_check_branch
          %223 = sbr.rel (%p221) target = $region44
        $region43: #{tpu_custom_call.1} parent=35 // pred_region
          %225 = dma.done [#allocation9], 256
        $region44: #{tpu_custom_call.1} parent=35 // pred_fallthru
          _
        %p226 = pneg %p57
        %p227 = pneg %p54
        %p228 = pneg %p83
        %p229 = pneg %p80
        %p230 = pneg %p104
        %p231 = pneg %p101
        %p232 = pneg %p125
        %p233 = pneg %p122
        %p234 = pneg %p153
        %p235 = pneg %p150
        %s236 = sand.u32 %s140, 1
        %s237 = scalar_lea.sflag [#allocation7], %s236
        %s238 = sand.u32 %s140, 1
        %s239 = smul.addr %s238, 16
        %s240 = scalar_lea.vmem [#allocation10], %s239
        %s241 = smul.u32 2, %s33
        %s242 = smul.u32 2, %s33
        %s243 = smul.u32 %s34, 16
        %s244 = smul.u32 %s33, 16
        %s245 = sadd.s32 %s243, %s244
        %s246 = sld [smem:[#allocation4 + %s245]]
        %s247 = scalar_lea.vmem [#allocation5], %s246
        %v248 = vld [vmem:[%s247] sm:$0x1]
        %249 = vst [vmem:[#allocation2] sm:$0x1] %v248
        %s250 = sadd.s32 %s245, 1
        %s251 = sld [smem:[#allocation4 + %s250]]
        %s252 = scalar_lea.vmem [#allocation5], %s251
        %v253 = vld [vmem:[%s252] sm:$0x1]
        %254 = vst [vmem:[#allocation2 + $0x1] sm:$0x1] %v253
        %s255 = sadd.s32 %s245, 2
        %s256 = sld [smem:[#allocation4 + %s255]]
        %s257 = scalar_lea.vmem [#allocation5], %s256
        %v258 = vld [vmem:[%s257] sm:$0x1]
        %259 = vst [vmem:[#allocation2 + $0x2] sm:$0x1] %v258
        %s260 = sadd.s32 %s245, 3
        %s261 = sld [smem:[#allocation4 + %s260]]
        %s262 = scalar_lea.vmem [#allocation5], %s261
        %v263 = vld [vmem:[%s262] sm:$0x1]
        %264 = vst [vmem:[#allocation2 + $0x3] sm:$0x1] %v263
        %s265 = sadd.s32 %s245, 4
        %s266 = sld [smem:[#allocation4 + %s265]]
        %s267 = scalar_lea.vmem [#allocation5], %s266
        %v268 = vld [vmem:[%s267] sm:$0x1]
        %269 = vst [vmem:[#allocation2 + $0x4] sm:$0x1] %v268
        %s270 = sadd.s32 %s245, 5
        %s271 = sld [smem:[#allocation4 + %s270]]
        %s272 = scalar_lea.vmem [#allocation5], %s271
        %v273 = vld [vmem:[%s272] sm:$0x1]
        %274 = vst [vmem:[#allocation2 + $0x5] sm:$0x1] %v273
        %s275 = sadd.s32 %s245, 6
        %s276 = sld [smem:[#allocation4 + %s275]]
        %s277 = scalar_lea.vmem [#allocation5], %s276
        %v278 = vld [vmem:[%s277] sm:$0x1]
        %279 = vst [vmem:[#allocation2 + $0x6] sm:$0x1] %v278
        %s280 = sadd.s32 %s245, 7
        %s281 = sld [smem:[#allocation4 + %s280]]
        %s282 = scalar_lea.vmem [#allocation5], %s281
        %v283 = vld [vmem:[%s282] sm:$0x1]
        %284 = vst [vmem:[#allocation2 + $0x7] sm:$0x1] %v283
        %s285 = sadd.s32 %s245, 8
        %s286 = sld [smem:[#allocation4 + %s285]]
        %s287 = scalar_lea.vmem [#allocation5], %s286
        %v288 = vld [vmem:[%s287] sm:$0x1]
        %289 = vst [vmem:[#allocation2 + $0x8] sm:$0x1] %v288
        %s290 = sadd.s32 %s245, 9
        %s291 = sld [smem:[#allocation4 + %s290]]
        %s292 = scalar_lea.vmem [#allocation5], %s291
        %v293 = vld [vmem:[%s292] sm:$0x1]
        %294 = vst [vmem:[#allocation2 + $0x9] sm:$0x1] %v293
        %s295 = sadd.s32 %s245, 10
        %s296 = sld [smem:[#allocation4 + %s295]]
        %s297 = scalar_lea.vmem [#allocation5], %s296
        %v298 = vld [vmem:[%s297] sm:$0x1]
        %299 = vst [vmem:[#allocation2 + $0xa] sm:$0x1] %v298
        %s300 = sadd.s32 %s245, 11
        %s301 = sld [smem:[#allocation4 + %s300]]
        %s302 = scalar_lea.vmem [#allocation5], %s301
        %v303 = vld [vmem:[%s302] sm:$0x1]
        %304 = vst [vmem:[#allocation2 + $0xb] sm:$0x1] %v303
        %s305 = sadd.s32 %s245, 12
        %s306 = sld [smem:[#allocation4 + %s305]]
        %s307 = scalar_lea.vmem [#allocation5], %s306
        %v308 = vld [vmem:[%s307] sm:$0x1]
        %309 = vst [vmem:[#allocation2 + $0xc] sm:$0x1] %v308
        %s310 = sadd.s32 %s245, 13
        %s311 = sld [smem:[#allocation4 + %s310]]
        %s312 = scalar_lea.vmem [#allocation5], %s311
        %v313 = vld [vmem:[%s312] sm:$0x1]
        %314 = vst [vmem:[#allocation2 + $0xd] sm:$0x1] %v313
        %s315 = sadd.s32 %s245, 14
        %s316 = sld [smem:[#allocation4 + %s315]]
        %s317 = scalar_lea.vmem [#allocation5], %s316
        %v318 = vld [vmem:[%s317] sm:$0x1]
        %319 = vst [vmem:[#allocation2 + $0xe] sm:$0x1] %v318
        %s320 = sadd.s32 %s245, 15
        %s321 = sld [smem:[#allocation4 + %s320]]
        %s322 = scalar_lea.vmem [#allocation5], %s321
        %v323 = vld [vmem:[%s322] sm:$0x1]
        %324 = vst [vmem:[#allocation2 + $0xf] sm:$0x1] %v323
        %v325 = vld [vmem:[#allocation2] sm:$0xff]
        %v326 = vld [vmem:[#allocation2 + $0x8] sm:$0xff]
        %v327 = vld [vmem:[#allocation8] sm:$0xff]
        %v328 = vld [vmem:[#allocation8 + $0x8] sm:$0xff]
        %v329 = vadd.f32 %v325, %v327
        %v330 = vadd.f32 %v326, %v328
        %331 = vadd.xlane.f32.xlu0 %v329
        %v332 = vpop.xlane.xlu0 %331
        %333 = vadd.xlane.f32.xlu0 %v330
        %v334 = vpop.xlane.xlu0 %333
        %v335 = vmul.f32 %v332, 0.0078125
        %v336 = vmul.f32 %v334, 0.0078125
        %v337 = vsub.f32 %v329, %v335
        %v338 = vsub.f32 %v330, %v336
        %v339 = vmul.f32 %v337, %v337
        %v340 = vmul.f32 %v338, %v338
        %341 = vadd.xlane.f32.xlu0 %v339
        %v342 = vpop.xlane.xlu0 %341
        %343 = vadd.xlane.f32.xlu0 %v340
        %v344 = vpop.xlane.xlu0 %343
        %v345 = vmul.f32 %v342, 0.0078125
        %v346 = vmul.f32 %v344, 0.0078125
        %v347 = vadd.f32 %v345, 1e-12
        %v348 = vadd.f32 %v346, 1e-12
        %v349 = vrsqrt.pop %v347
        %v350 = vmul.f32 %v349, %v347
        %v351 = vmul.f32 %v350, %v349
        %v352 = vmul.f32 0.5, %v351
        %v353 = vsub.f32 1.5, %v352
        %v354 = vmul.f32 %v349, %v353
        %vm355 = vweird.f32 %v347
        %vm356 = vweird.f32 %v349
        %vm357 = vmor %vm355, %vm356
        %v358 = vsel %vm357, %v349, %v354
        %v359 = vrsqrt.pop %v348
        %v360 = vmul.f32 %v359, %v348
        %v361 = vmul.f32 %v360, %v359
        %v362 = vmul.f32 0.5, %v361
        %v363 = vsub.f32 1.5, %v362
        %v364 = vmul.f32 %v359, %v363
        %vm365 = vweird.f32 %v348
        %vm366 = vweird.f32 %v359
        %vm367 = vmor %vm365, %vm366
        %v368 = vsel %vm367, %v359, %v364
        %v369 = vmul.f32 %v337, %v358
        %v370 = vmul.f32 %v338, %v368
        %v371 = vld [vmem:[%s3] sm:$0x1]
        %v373 = vperm.slane %v371, 0
        %v375 = vmul.f32 %v373, %v369
        %v376 = vmul.f32 %v373, %v370
        %v377 = vld [vmem:[%s4] sm:$0x1]
        %v379 = vperm.slane %v377, 0
        %v381 = vadd.f32 %v375, %v379
        %v382 = vadd.f32 %v376, %v379
        %383 = vst [vmem:[%s240] sm:$0xff] %v381
        %384 = vst [vmem:[%s240 + $0x8] sm:$0xff] %v382
        %s385 = sand.u32 %s140, 1
        %s386 = scalar_lea.sflag [#allocation7], %s385
        %s387 = sand.u32 %s140, 1
        %s388 = smul.addr %s387, 16
        %s389 = scalar_lea.vmem [#allocation10], %s388
        // Predicated region
        $region45: #{tpu_custom_call.1} parent=35 // pred_check
          %p390 = pneg %p150
        $region46: #{tpu_custom_call.1} parent=35 // pred_check_branch
          %392 = sbr.rel (%p390) target = $region48
        $region47: #{tpu_custom_call.1} parent=35 // pred_region
          %s393 = smul.u32 2, %s33
          %395 = vsyncadd %s386, 0
          %s396 = smul.addr %s34, 2
          %s397 = sadd.s32 %s393, %s396
          %s398 = smul.addr %s397, 8
          %s399 = scalar_lea.hbm %s5, %s398
          %s400 = sshll.u32 %s389, 4
          %s401 = int_to_ptr.vmem [resolvable:$true] %s400
          %s402 = sshll.u32 %s399, 4
          %s403 = int_to_ptr.hbm [resolvable:$true] %s402
          %408 = dma.vmem_to_hbm [thread:$0]  %s401, 256, %s403, %s386, 128, 128, 8
        $region48: #{tpu_custom_call.1} parent=35 // pred_fallthru
          _
      $region36: #{tpu_custom_call.1} parent=5 // pred_fallthru
        _
      %p409 = scmp.le.s32.totalorder 2, %s24
      // Predicated region
      $region49: #{tpu_custom_call.1} parent=5 // pred_check
        %p410 = pneg %p409
      $region50: #{tpu_custom_call.1} parent=5 // pred_check_branch
        %412 = sbr.rel (%p410) target = $region52
      $region51: #{tpu_custom_call.1} parent=5 // pred_region
        %s413 = ssub.s32 %s24, 2
        // Predicated region
        $region53: #{tpu_custom_call.1} parent=51 // pred_check
          %p414 = pneg %p156
        $region54: #{tpu_custom_call.1} parent=51 // pred_check_branch
          %416 = sbr.rel (%p414) target = $region56
        $region55: #{tpu_custom_call.1} parent=51 // pred_region
          %s417 = sand.u32 %s141, 1
          %s418 = scalar_lea.sflag [#allocation7], %s417
          %s419 = sand.u32 %s141, 1
          %s420 = smul.addr %s419, 16
          %s421 = scalar_lea.vmem [#allocation10], %s420
          %423 = dma.done %s418, 256
        $region56: #{tpu_custom_call.1} parent=51 // pred_fallthru
          _
      $region52: #{tpu_custom_call.1} parent=5 // pred_fallthru
        _
    $region6: #{tpu_custom_call.1} parent=1 // loop_footer
      %s28 = sadd.s32 1, %s24
    $region7: #{tpu_custom_call.1} parent=1 // loop_footer_branch
      %23 = sbr.rel target = $region3
    $region8: #{tpu_custom_call.1} parent=1 // loop_exit
      _
    %424 = vsyncpa [#allocation6], 1
    %s425 = scalar_lea.sflag [#allocation6], 1
    %426 = vsyncpa %s425, 1
    %427 = vsyncpa [#allocation9], 1
    %428 = vsyncpa [#allocation7], 1
    %s429 = scalar_lea.sflag [#allocation7], 1
    %430 = vsyncpa %s429, 1

</llo_original>
